<compile_context>
chip_gen: v7x
topology: tpu7x:2x2x1
jax: 0.10.0
libtpu: 0.0.40
codegen_flags: <defaults>
</compile_context>

<pallas_src>
import jax
import jax.numpy as jnp
from jax.experimental import pallas as pl
from jax.experimental.pallas import tpu as pltpu


def _pick_lane_chunk(C, S):
    # Largest lane-aligned chunk that divides S while keeping the fused
    # sum/max accumulators (2 * C * chunk f32) comfortably within vregs.
    for chunk in (1024, 512, 256, 128):
        if S % chunk == 0 and C * chunk <= 8192:
            return chunk
    return S  # fallback: single pass over the whole (possibly unaligned) tile


def _make_se3d_kernel(C, S, hidden, lane_chunk):
    n_chunks = S // lane_chunk
    inv_s = 1.0 / float(S)

    def kernel(x_ref, w1m_ref, w1x_ref, w2_ref, o_ref):
        # x_ref:   (C, S)      one batch element's tile (native dtype)
        # w1m_ref: (C, hidden) = w1[:, :C].T  (f32)
        # w1x_ref: (C, hidden) = w1[:, C:].T  (f32)
        # w2_ref:  (C, hidden)                (f32)
        # o_ref:   (C, S)

        # --- fused single-pass spatial reduction: sum + max in one traversal
        def body(i, carry):
            s_acc, m_acc = carry
            start = pl.multiple_of(i * lane_chunk, lane_chunk)
            xc = x_ref[:, pl.ds(start, lane_chunk)].astype(jnp.float32)
            return s_acc + xc, jnp.maximum(m_acc, xc)

        s_acc, m_acc = jax.lax.fori_loop(
            0, n_chunks, body,
            (jnp.zeros((C, lane_chunk), jnp.float32),
             jnp.full((C, lane_chunk), -jnp.inf, jnp.float32)))

        x_mean = jnp.sum(s_acc, axis=-1, keepdims=True) * inv_s   # (C, 1)
        x_max = jnp.max(m_acc, axis=-1, keepdims=True)            # (C, 1)

        # --- gate: tiny channel mixing on VPU + small reduces (no concat,
        #     no MXU pass for a lane-width-1 output).
        # h[j] = sum_c w1[j, c] * mean[c] + w1[j, C + c] * max[c]
        h = jnp.sum(w1m_ref[...] * x_mean + w1x_ref[...] * x_max,
                    axis=0, keepdims=True)                        # (1, hidden)
        h = jnp.maximum(h, 0.0)                                   # ReLU
        a = jax.nn.sigmoid(
            jnp.sum(w2_ref[...] * h, axis=1, keepdims=True))      # (C, 1)

        # --- scale: re-read the tile in its native dtype (no f32 copy kept
        # live across the gate). On v5e a sub-32-bit multiply widens anyway;
        # inputs here are f32 so the multiply is exact vs. the reference.
        o_ref[...] = x_ref[...] * a.astype(o_ref.dtype)

    return kernel


def se3d(x, w1, w2):
    """x: (N, C, D, H, W); w1: (hidden, 2C); w2: (C, hidden)."""
    N, C, D, H, W = x.shape
    S = D * H * W
    hidden = w1.shape[0]
    x3 = x.reshape(N, C, S)

    # Pre-split / transpose the 1x1x1 conv weights at trace time (tiny) so
    # the in-kernel gate needs no concat and no transpose.
    w1m = jnp.asarray(w1[:, :C].T, dtype=jnp.float32)   # (C, hidden)
    w1x = jnp.asarray(w1[:, C:].T, dtype=jnp.float32)   # (C, hidden)
    w2f = jnp.asarray(w2, dtype=jnp.float32)             # (C, hidden)

    lane_chunk = _pick_lane_chunk(C, S)
    kernel = _make_se3d_kernel(C, S, hidden, lane_chunk)

    itemsize = jnp.dtype(x.dtype).itemsize
    tile_bytes = C * S * itemsize
    # in + out blocks are each double-buffered by the pipeline (~4x tile),
    # plus loop accumulators, weights, and compiler scratch headroom.
    vmem_limit = (4 * tile_bytes + 2 * C * lane_chunk * 4
                  + 12 * C * hidden * 4 + (4 << 20))
    vmem_limit = int(min(max(vmem_limit, 32 << 20), 100 << 20))

    cost = pl.CostEstimate(
        flops=int(3 * N * C * S + 6 * N * C * hidden),
        transcendentals=int(N * C),
        bytes_accessed=int(2 * N * C * S * itemsize + 3 * C * hidden * 4),
    )

    out3 = pl.pallas_call(
        kernel,
        out_shape=jax.ShapeDtypeStruct((N, C, S), x.dtype),
        grid_spec=pltpu.PrefetchScalarGridSpec(
            num_scalar_prefetch=0,
            grid=(N,),
            in_specs=[
                pl.BlockSpec((None, C, S), lambda n: (n, 0, 0)),
                pl.BlockSpec((C, hidden), lambda n: (0, 0)),
                pl.BlockSpec((C, hidden), lambda n: (0, 0)),
                pl.BlockSpec((C, hidden), lambda n: (0, 0)),
            ],
            out_specs=pl.BlockSpec((None, C, S), lambda n: (n, 0, 0)),
        ),
        compiler_params=pltpu.CompilerParams(
            dimension_semantics=("parallel",),
            vmem_limit_bytes=vmem_limit,
        ),
        cost_estimate=cost,
    )(x3, w1m, w1x, w2f)
    return out3.reshape(N, C, D, H, W)


def se3d_reference(x, w1, w2):
    # pure-JAX reference mirroring the PyTorch module
    x_mean = x.mean(axis=(2, 3, 4), keepdims=True)                 # (N,C,1,1,1)
    x_max = x.max(axis=(2, 3, 4), keepdims=True)                   # (N,C,1,1,1)
    x_se = jnp.concatenate([x_mean, x_max], axis=1)[..., 0, 0, 0]  # (N, 2C)
    h = jnp.maximum(x_se @ w1.T, 0.0)                              # (N, hidden)
    a = jax.nn.sigmoid(h @ w2.T)                                   # (N, C)
    return x * a[:, :, None, None, None]


if __name__ == "__main__":
    # small shapes consistent with the module: N=2, C=16, fact=4 -> hidden=4,
    # spatial 4x16x16 (S=1024 -> exercises the 2-chunk fused reduction).
    N, C, D, H, W = 2, 16, 4, 16, 16
    fact = 4
    hidden = C // fact

    key = jax.random.PRNGKey(0)
    kx, k1, k2 = jax.random.split(key, 3)
    x = jax.random.normal(kx, (N, C, D, H, W), dtype=jnp.float32)
    # Conv3d(2C -> hidden, 1, bias=False) weight (hidden, 2C, 1,1,1) -> (hidden, 2C)
    w1 = 0.1 * jax.random.normal(k1, (hidden, 2 * C), dtype=jnp.float32)
    # Conv3d(hidden -> C, 1, bias=False) weight (C, hidden, 1,1,1) -> (C, hidden)
    w2 = 0.1 * jax.random.normal(k2, (C, hidden), dtype=jnp.float32)

    out = jax.block_until_ready(se3d(x, w1, w2))
    ref = jax.block_until_ready(se3d_reference(x, w1, w2))

    assert out.shape == x.shape
    assert jnp.allclose(out, ref, atol=1e-5, rtol=1e-5), "mismatch vs reference"
    print("KERNEL_OK")
</pallas_src>

<mosaic_0001>
module attributes {stable_mosaic.version = 11 : i64} {
  func.func @kernel(%arg0: i32, %arg1: memref<1x16x1024xf32, #tpu.memory_space<vmem>>, %arg2: memref<16x4xf32, #tpu.memory_space<vmem>>, %arg3: memref<16x4xf32, #tpu.memory_space<vmem>>, %arg4: memref<16x4xf32, #tpu.memory_space<vmem>>, %arg5: memref<1x16x1024xf32, #tpu.memory_space<vmem>>) attributes {dimension_semantics = [#tpu.dimension_semantics<parallel>], iteration_bounds = array<i64: 2>, scalar_prefetch = 0 : i64, scratch_operands = 0 : i64, tpu.core_type = #tpu.core_type<tc>, window_params = [{transform_indices = @transform_0, window_bounds = array<i64: 1, 16, 1024>}, {pipeline_mode = #tpu.pipeline_mode<synchronous>, transform_indices = @transform_1, window_bounds = array<i64: 16, 4>}, {pipeline_mode = #tpu.pipeline_mode<synchronous>, transform_indices = @transform_2, window_bounds = array<i64: 16, 4>}, {pipeline_mode = #tpu.pipeline_mode<synchronous>, transform_indices = @transform_3, window_bounds = array<i64: 16, 4>}, {transform_indices = @transform_4, window_bounds = array<i64: 1, 16, 1024>}]} {
    %cst = arith.constant 0.000000e+00 : f32
    %0 = vector.broadcast %cst : f32 to vector<16x512xf32>
    %cst_0 = arith.constant 0xFF800000 : f32
    %1 = vector.broadcast %cst_0 : f32 to vector<16x512xf32>
    %c0_i32 = arith.constant 0 : i32
    %c2_i32 = arith.constant 2 : i32
    %2 = arith.addi %c0_i32, %c2_i32 : i32
    %c1_i32 = arith.constant 1 : i32
    %3:2 = scf.for %arg6 = %c0_i32 to %2 step %c1_i32 iter_args(%arg7 = %0, %arg8 = %1) -> (vector<16x512xf32>, vector<16x512xf32>)  : i32 {
      %c512_i32 = arith.constant 512 : i32
      %38 = arith.muli %arg6, %c512_i32 : i32
      %39 = tpu.assume_multiple %38, 512 : i32
      %c0_20 = arith.constant 0 : index
      %c0_21 = arith.constant 0 : index
      %40 = arith.index_cast %39 : i32 to index
      %41 = vector.load %arg1[%c0_20, %c0_21, %40] : memref<1x16x1024xf32, #tpu.memory_space<vmem>>, vector<1x16x512xf32>
      %42 = vector.shape_cast %41 : vector<1x16x512xf32> to vector<16x512xf32>
      %43 = arith.addf %arg7, %42 : vector<16x512xf32>
      %44 = arith.maximumf %arg8, %42 : vector<16x512xf32>
      scf.yield %43, %44 : vector<16x512xf32>, vector<16x512xf32>
    }
    %c2_i32_1 = arith.constant 2 : i32
    %cst_2 = arith.constant dense<0.000000e+00> : vector<16xf32>
    %4 = vector.multi_reduction <add>, %3#0, %cst_2 [1] : vector<16x512xf32> to vector<16xf32>
    %5 = vector.shape_cast %4 : vector<16xf32> to vector<16x1xf32>
    %cst_3 = arith.constant 9.765625E-4 : f32
    %6 = vector.broadcast %cst_3 : f32 to vector<16x1xf32>
    %7 = arith.mulf %5, %6 : vector<16x1xf32>
    %cst_4 = arith.constant dense<0xFF800000> : vector<16xf32>
    %8 = vector.multi_reduction <maximumf>, %3#1, %cst_4 [1] : vector<16x512xf32> to vector<16xf32>
    %9 = vector.shape_cast %8 : vector<16xf32> to vector<16x1xf32>
    %c0 = arith.constant 0 : index
    %c0_5 = arith.constant 0 : index
    %10 = vector.load %arg2[%c0, %c0_5] : memref<16x4xf32, #tpu.memory_space<vmem>>, vector<16x4xf32>
    %11 = vector.broadcast %7 : vector<16x1xf32> to vector<16x4xf32>
    %12 = arith.mulf %10, %11 : vector<16x4xf32>
    %c0_6 = arith.constant 0 : index
    %c0_7 = arith.constant 0 : index
    %13 = vector.load %arg3[%c0_6, %c0_7] : memref<16x4xf32, #tpu.memory_space<vmem>>, vector<16x4xf32>
    %14 = vector.broadcast %9 : vector<16x1xf32> to vector<16x4xf32>
    %15 = arith.mulf %13, %14 : vector<16x4xf32>
    %16 = arith.addf %12, %15 : vector<16x4xf32>
    %cst_8 = arith.constant dense<0.000000e+00> : vector<4xf32>
    %17 = vector.multi_reduction <add>, %16, %cst_8 [0] : vector<16x4xf32> to vector<4xf32>
    %18 = vector.shape_cast %17 : vector<4xf32> to vector<1x4xf32>
    %cst_9 = arith.constant 0.000000e+00 : f32
    %19 = vector.broadcast %cst_9 : f32 to vector<1x4xf32>
    %20 = arith.maximumf %18, %19 : vector<1x4xf32>
    %c0_10 = arith.constant 0 : index
    %c0_11 = arith.constant 0 : index
    %21 = vector.load %arg4[%c0_10, %c0_11] : memref<16x4xf32, #tpu.memory_space<vmem>>, vector<16x4xf32>
    %22 = vector.broadcast %20 : vector<1x4xf32> to vector<16x4xf32>
    %23 = arith.mulf %21, %22 : vector<16x4xf32>
    %cst_12 = arith.constant dense<0.000000e+00> : vector<16xf32>
    %24 = vector.multi_reduction <add>, %23, %cst_12 [1] : vector<16x4xf32> to vector<16xf32>
    %25 = vector.shape_cast %24 : vector<16xf32> to vector<16x1xf32>
    %26 = arith.negf %25 : vector<16x1xf32>
    %27 = math.exp %26 : vector<16x1xf32>
    %cst_13 = arith.constant 1.000000e+00 : f32
    %28 = vector.broadcast %cst_13 : f32 to vector<16x1xf32>
    %29 = arith.addf %28, %27 : vector<16x1xf32>
    %30 = arith.divf %28, %29 : vector<16x1xf32>
    %c0_14 = arith.constant 0 : index
    %c0_15 = arith.constant 0 : index
    %c0_16 = arith.constant 0 : index
    %31 = vector.load %arg1[%c0_14, %c0_15, %c0_16] : memref<1x16x1024xf32, #tpu.memory_space<vmem>>, vector<1x16x1024xf32>
    %32 = vector.shape_cast %31 : vector<1x16x1024xf32> to vector<16x1024xf32>
    %33 = vector.broadcast %30 : vector<16x1xf32> to vector<16x1024xf32>
    %34 = arith.mulf %32, %33 : vector<16x1024xf32>
    %c0_17 = arith.constant 0 : index
    %c0_18 = arith.constant 0 : index
    %c0_19 = arith.constant 0 : index
    %35 = vector.load %arg5[%c0_17, %c0_18, %c0_19] : memref<1x16x1024xf32, #tpu.memory_space<vmem>>, vector<1x16x1024xf32>
    %36 = vector.shape_cast %35 : vector<1x16x1024xf32> to vector<16x1024xf32>
    %37 = vector.shape_cast %34 : vector<16x1024xf32> to vector<1x16x1024xf32>
    tpu.vector_store %arg5[%c0_17, %c0_18, %c0_19], %37 {strides = array<i32>} : memref<1x16x1024xf32, #tpu.memory_space<vmem>>, vector<1x16x1024xf32>,
    return
  }
  func.func @transform_0(%arg0: i32) -> (i32, i32, i32) {
    %c0_i32 = arith.constant 0 : i32
    %c0_i32_0 = arith.constant 0 : i32
    %c0_i32_1 = arith.constant 0 : i32
    return %arg0, %c0_i32, %c0_i32_0 : i32, i32, i32
  }
  func.func @transform_1(%arg0: i32) -> (i32, i32) {
    %c0_i32 = arith.constant 0 : i32
    %c0_i32_0 = arith.constant 0 : i32
    %c0_i32_1 = arith.constant 0 : i32
    return %c0_i32, %c0_i32_0 : i32, i32
  }
  func.func @transform_2(%arg0: i32) -> (i32, i32) {
    %c0_i32 = arith.constant 0 : i32
    %c0_i32_0 = arith.constant 0 : i32
    %c0_i32_1 = arith.constant 0 : i32
    return %c0_i32, %c0_i32_0 : i32, i32
  }
  func.func @transform_3(%arg0: i32) -> (i32, i32) {
    %c0_i32 = arith.constant 0 : i32
    %c0_i32_0 = arith.constant 0 : i32
    %c0_i32_1 = arith.constant 0 : i32
    return %c0_i32, %c0_i32_0 : i32, i32
  }
  func.func @transform_4(%arg0: i32) -> (i32, i32, i32) {
    %c0_i32 = arith.constant 0 : i32
    %c0_i32_0 = arith.constant 0 : i32
    %c0_i32_1 = arith.constant 0 : i32
    return %arg0, %c0_i32, %c0_i32_0 : i32, i32, i32
  }
}

</mosaic_0001>

<llo_original>
// kernel: tpu_custom_call.1
$region0: #{tpu_custom_call.1}
  #allocation0 [shape = 'u32[]', space=smem, size = 0x4, offset = 0x4, fixed_abs, tag = 'smem constant byte address 0x4 - core index']
  #allocation1 [shape = 'u32[144,128]{1,0:T(1,128)}', space=vmem, size = 0x12000, scoped, tag = 'internal scratch']
  %s0 = inlined_call_operand.hbm [shape: f32[2,16,1024], index: 0, kind: input, shape index: {}]
  %s1 = inlined_call_operand.vmem [shape: f32[16,4], index: 1, kind: input, shape index: {}]
  %s2 = inlined_call_operand.vmem [shape: f32[16,4], index: 2, kind: input, shape index: {}]
  %s3 = inlined_call_operand.vmem [shape: f32[16,4], index: 3, kind: input, shape index: {}]
  %s4 = inlined_call_operand.hbm [shape: f32[2,16,1024], index: 4, kind: output, shape index: {}]
  %s5 = sld [smem:[#allocation0]]
  $region60: #{tpu_custom_call.1} parent=0
    _
  %s7 = ssub.s32 1, %s5
  %s8 = scalar_select 0, %s7, %s5
  $region1: #{tpu_custom_call.1} parent=0
    #allocation2 [shape = 'u8[131072]{0}', space=vmem, size = 0x20000, scoped, tag = 'input window, operand 0']
    #allocation3 [shape = 's32[2]{0}', space=sflag, size = 0x8, scoped, tag = 'scoped memory for tpu_custom_call.1']
    #allocation4 [shape = 's32[2]{0}', space=sflag, size = 0x8, scoped, tag = 'scoped memory for tpu_custom_call.1']
    #allocation5 [shape = 'u8[131072]{0}', space=vmem, size = 0x20000, scoped, tag = 'output window, operand 0']
    %9 = vsyncpa [#allocation3], 0
    %s10 = scalar_lea.sflag [#allocation3], 1
    %11 = vsyncpa %s10, 0
    %12 = vsyncpa [#allocation4], 0
    %s13 = scalar_lea.sflag [#allocation4], 1
    %14 = vsyncpa %s13, 0
    loop: start=0, step=1, limit=4
    $region2: #{tpu_custom_call.1} parent=1 // loop_pre_header
      _
    $region3: #{tpu_custom_call.1} parent=1 // loop_header
      %s16 = sphi 0, %s20
      %p17 = scmp.ge.s32.totalorder %s16, 4
      %s26 = sphi 0, %s28
      %s29 = sphi 0, %s26
      %s30 = sphi 0, %s29
      %s46 = sphi 0, %s30
      %s50 = sphi 0, %s50
      %s52 = sphi 0, %s50
      %s53 = sphi 0, %s52
      %s67 = sphi 0, %s53
      %s71 = sphi 0, %s71
      %s73 = sphi 0, %s71
      %s74 = sphi 0, %s73
      %s88 = sphi 0, %s74
      %s92 = sphi 0, %s92
      %s94 = sphi 0, %s92
      %s95 = sphi 0, %s94
      %s109 = sphi 0, %s95
      %s115 = sphi 0, %s117
      %s118 = sphi 0, %s115
      %s119 = sphi 0, %s118
      %s135 = sphi 0, %s119
    $region4: #{tpu_custom_call.1} parent=1 // loop_header_branch
      %19 = sbr.rel (%p17) target = $region8
    $region5: #{tpu_custom_call.1} parent=1 // loop_body
      %s21 = ssub.s32 %s16, 1
      %s22 = ssub.s32 %s16, 2
      %s23 = sadd.s32 %s16, 1
      %s24 = ssub.s32 %s16, %s23
      %p25 = scmp.eq.s32.totalorder %s24, 0
      %s27 = sadd.s32 %s26, 1
      %s28 = scalar_select %p25, %s26, %s27
      %p31 = pneg %p25
      %p32 = scmp.eq.s32.totalorder %s16, 1
      %p33 = por %p31, %p32
      %p34 = scmp.ne.s32.totalorder %s26, %s29
      %p35 = scmp.eq.s32.totalorder %s16, 0
      %p36 = por %p34, %p35
      %p37 = scmp.ne.s32.totalorder %s26, %s29
      %p38 = scmp.eq.s32.totalorder %s21, 1
      %p39 = por %p37, %p38
      %p40 = scmp.ne.s32.totalorder %s29, %s30
      %p41 = scmp.eq.s32.totalorder %s21, 0
      %p42 = por %p40, %p41
      %p43 = scmp.ne.s32.totalorder %s29, %s30
      %p44 = scmp.eq.s32.totalorder %s22, 1
      %p45 = por %p43, %p44
      %p47 = scmp.ne.s32.totalorder %s30, %s46
      %p48 = scmp.eq.s32.totalorder %s22, 0
      %p49 = por %p47, %p48
      %s51 = sadd.s32 %s50, 1
      %p54 = scmp.eq.s32.totalorder %s16, 1
      %p55 = scmp.ne.s32.totalorder %s50, %s52
      %p56 = scmp.eq.s32.totalorder %s16, 0
      %p57 = por %p55, %p56
      %p58 = scmp.ne.s32.totalorder %s50, %s52
      %p59 = scmp.eq.s32.totalorder %s21, 1
      %p60 = por %p58, %p59
      %p61 = scmp.ne.s32.totalorder %s52, %s53
      %p62 = scmp.eq.s32.totalorder %s21, 0
      %p63 = por %p61, %p62
      %p64 = scmp.ne.s32.totalorder %s52, %s53
      %p65 = scmp.eq.s32.totalorder %s22, 1
      %p66 = por %p64, %p65
      %p68 = scmp.ne.s32.totalorder %s53, %s67
      %p69 = scmp.eq.s32.totalorder %s22, 0
      %p70 = por %p68, %p69
      %s72 = sadd.s32 %s71, 1
      %p75 = scmp.eq.s32.totalorder %s16, 1
      %p76 = scmp.ne.s32.totalorder %s71, %s73
      %p77 = scmp.eq.s32.totalorder %s16, 0
      %p78 = por %p76, %p77
      %p79 = scmp.ne.s32.totalorder %s71, %s73
      %p80 = scmp.eq.s32.totalorder %s21, 1
      %p81 = por %p79, %p80
      %p82 = scmp.ne.s32.totalorder %s73, %s74
      %p83 = scmp.eq.s32.totalorder %s21, 0
      %p84 = por %p82, %p83
      %p85 = scmp.ne.s32.totalorder %s73, %s74
      %p86 = scmp.eq.s32.totalorder %s22, 1
      %p87 = por %p85, %p86
      %p89 = scmp.ne.s32.totalorder %s74, %s88
      %p90 = scmp.eq.s32.totalorder %s22, 0
      %p91 = por %p89, %p90
      %s93 = sadd.s32 %s92, 1
      %p96 = scmp.eq.s32.totalorder %s16, 1
      %p97 = scmp.ne.s32.totalorder %s92, %s94
      %p98 = scmp.eq.s32.totalorder %s16, 0
      %p99 = por %p97, %p98
      %p100 = scmp.ne.s32.totalorder %s92, %s94
      %p101 = scmp.eq.s32.totalorder %s21, 1
      %p102 = por %p100, %p101
      %p103 = scmp.ne.s32.totalorder %s94, %s95
      %p104 = scmp.eq.s32.totalorder %s21, 0
      %p105 = por %p103, %p104
      %p106 = scmp.ne.s32.totalorder %s94, %s95
      %p107 = scmp.eq.s32.totalorder %s22, 1
      %p108 = por %p106, %p107
      %p110 = scmp.ne.s32.totalorder %s95, %s109
      %p111 = scmp.eq.s32.totalorder %s22, 0
      %p112 = por %p110, %p111
      %s113 = ssub.s32 %s16, %s23
      %p114 = scmp.eq.s32.totalorder %s113, 0
      %s116 = sadd.s32 %s115, 1
      %s117 = scalar_select %p114, %s115, %s116
      %p120 = pneg %p114
      %p121 = scmp.eq.s32.totalorder %s16, 1
      %p122 = por %p120, %p121
      %p123 = scmp.ne.s32.totalorder %s115, %s118
      %p124 = scmp.eq.s32.totalorder %s16, 0
      %p125 = por %p123, %p124
      %p126 = scmp.ne.s32.totalorder %s115, %s118
      %p127 = scmp.eq.s32.totalorder %s21, 1
      %p128 = por %p126, %p127
      %p129 = scmp.ne.s32.totalorder %s118, %s119
      %p130 = scmp.eq.s32.totalorder %s21, 0
      %p131 = por %p129, %p130
      %p132 = scmp.ne.s32.totalorder %s118, %s119
      %p133 = scmp.eq.s32.totalorder %s22, 1
      %p134 = por %p132, %p133
      %p136 = scmp.ne.s32.totalorder %s119, %s135
      %p137 = scmp.eq.s32.totalorder %s22, 0
      %p138 = por %p136, %p137
      %p139 = scmp.le.s32.totalorder 1, %s16
      %p140 = scmp.lt.s32.totalorder %s16, 3
      %p141 = pnand %p139, %p140
      %p142 = pneg %p141
      // Predicated region
      $region9: #{tpu_custom_call.1} parent=5 // pred_check
        _
      $region10: #{tpu_custom_call.1} parent=5 // pred_check_branch
        %144 = sbr.rel (%p141) target = $region12
      $region11: #{tpu_custom_call.1} parent=5 // pred_region
        %s145 = ssub.s32 %s16, 1
        // Predicated region
        $region13: #{tpu_custom_call.1} parent=11 // pred_check
          %p146 = pneg %p63
        $region14: #{tpu_custom_call.1} parent=11 // pred_check_branch
          %148 = sbr.rel (%p146) target = $region16
        $region15: #{tpu_custom_call.1} parent=11 // pred_region
          _
        $region16: #{tpu_custom_call.1} parent=11 // pred_fallthru
          _
        // Predicated region
        $region17: #{tpu_custom_call.1} parent=11 // pred_check
          %p149 = pneg %p84
        $region18: #{tpu_custom_call.1} parent=11 // pred_check_branch
          %151 = sbr.rel (%p149) target = $region20
        $region19: #{tpu_custom_call.1} parent=11 // pred_region
          _
        $region20: #{tpu_custom_call.1} parent=11 // pred_fallthru
          _
        // Predicated region
        $region21: #{tpu_custom_call.1} parent=11 // pred_check
          %p152 = pneg %p105
        $region22: #{tpu_custom_call.1} parent=11 // pred_check_branch
          %154 = sbr.rel (%p152) target = $region24
        $region23: #{tpu_custom_call.1} parent=11 // pred_region
          _
        $region24: #{tpu_custom_call.1} parent=11 // pred_fallthru
          _
      $region12: #{tpu_custom_call.1} parent=5 // pred_fallthru
        _
      %p155 = scmp.lt.s32.totalorder %s16, 2
      // Predicated region
      $region25: #{tpu_custom_call.1} parent=5 // pred_check
        %p156 = pneg %p155
      $region26: #{tpu_custom_call.1} parent=5 // pred_check_branch
        %158 = sbr.rel (%p156) target = $region28
      $region27: #{tpu_custom_call.1} parent=5 // pred_region
        // Predicated region
        $region29: #{tpu_custom_call.1} parent=27 // pred_check
          %p159 = pneg %p36
        $region30: #{tpu_custom_call.1} parent=27 // pred_check_branch
          %161 = sbr.rel (%p159) target = $region32
        $region31: #{tpu_custom_call.1} parent=27 // pred_region
          %s162 = sand.u32 %s26, 1
          %s163 = scalar_lea.sflag [#allocation3], %s162
          %s164 = sand.u32 %s26, 1
          %s165 = smul.addr %s164, 128
          %s166 = scalar_lea.vmem [#allocation2], %s165
          %s168 = ssub.s32 2048, 2048
          %169 = vsyncadd %s163, %s168
          %s170 = smul.addr %s16, 16
          %s171 = smul.addr %s170, 128
          %s172 = scalar_lea.hbm %s0, %s171
          %s173 = sshll.u32 %s166, 4
          %s174 = int_to_ptr.vmem [resolvable:$true] %s173
          %179 = dma.hbm_to_vmem [thread:$0]  %s172, 2048, %s174, %s163, 1024, 1024, 64
        $region32: #{tpu_custom_call.1} parent=27 // pred_fallthru
          _
      $region28: #{tpu_custom_call.1} parent=5 // pred_fallthru
        _
      %p180 = scmp.le.s32.totalorder 1, %s16
      %p181 = scmp.lt.s32.totalorder %s16, 3
      %p182 = pnand %p180, %p181
      %p183 = pneg %p182
      // Predicated region
      $region33: #{tpu_custom_call.1} parent=5 // pred_check
        _
      $region34: #{tpu_custom_call.1} parent=5 // pred_check_branch
        %185 = sbr.rel (%p182) target = $region36
      $region35: #{tpu_custom_call.1} parent=5 // pred_region
        %s186 = ssub.s32 %s16, 1
        %s187 = sand.u32 %s29, 1
        %s188 = scalar_lea.sflag [#allocation3], %s187
        %s189 = sand.u32 %s29, 1
        %s190 = smul.addr %s189, 128
        %s191 = scalar_lea.vmem [#allocation2], %s190
        // Predicated region
        $region37: #{tpu_custom_call.1} parent=35 // pred_check
          %p192 = pneg %p42
        $region38: #{tpu_custom_call.1} parent=35 // pred_check_branch
          %194 = sbr.rel (%p192) target = $region40
        $region39: #{tpu_custom_call.1} parent=35 // pred_region
          %195 = dma.done %s188, 2048
        $region40: #{tpu_custom_call.1} parent=35 // pred_fallthru
          _
        %s196 = sand.u32 %s29, 1
        %s197 = scalar_lea.sflag [#allocation3], %s196
        %s198 = sand.u32 %s29, 1
        %s199 = smul.addr %s198, 128
        %s200 = scalar_lea.vmem [#allocation2], %s199
        %p201 = pneg %p42
        %p202 = pneg %p39
        %p203 = pneg %p63
        %p204 = pneg %p60
        %p205 = pneg %p84
        %p206 = pneg %p81
        %p207 = pneg %p105
        %p208 = pneg %p102
        %p209 = pneg %p131
        %p210 = pneg %p128
        %s211 = sand.u32 %s118, 1
        %s212 = scalar_lea.sflag [#allocation4], %s211
        %s213 = sand.u32 %s118, 1
        %s214 = smul.addr %s213, 128
        %s215 = scalar_lea.vmem [#allocation5], %s214
        loop: start=0, step=1, limit=2
        $region41: #{tpu_custom_call.1} parent=35 // loop_pre_header
          _
        $region42: #{tpu_custom_call.1} parent=35 // loop_header
          %s217 = sphi 0, %s221
          %p218 = scmp.ge.s32.totalorder %s217, 2
          %v222 = vphi 0.0, %v251
          %v223 = vphi 0.0, %v252
          %v224 = vphi 0.0, %v253
          %v225 = vphi 0.0, %v254
          %v226 = vphi 0.0, %v255
          %v227 = vphi 0.0, %v256
          %v228 = vphi 0.0, %v257
          %v229 = vphi 0.0, %v258
          %v230 = vphi -inf, %v259
          %v231 = vphi -inf, %v260
          %v232 = vphi -inf, %v261
          %v233 = vphi -inf, %v262
          %v234 = vphi -inf, %v263
          %v235 = vphi -inf, %v264
          %v236 = vphi -inf, %v265
          %v237 = vphi -inf, %v266
        $region43: #{tpu_custom_call.1} parent=35 // loop_header_branch
          %220 = sbr.rel (%p218) target = $region47
        $region44: #{tpu_custom_call.1} parent=35 // loop_body
          %s238 = smul.u32 %s217, 512
          %s239 = sshra.s32 %s238, 7
          %s240 = sand.u32 %s238, 127
          %s241 = smul.addr %s239, 8
          %s242 = scalar_lea.vmem %s191, %s241 [#allocation2]
          %v243 = vld [vmem:[%s242] sm:$0xff]
          %v244 = vld [vmem:[%s242 + $0x8] sm:$0xff]
          %v245 = vld [vmem:[%s242 + $0x10] sm:$0xff]
          %v246 = vld [vmem:[%s242 + $0x18] sm:$0xff]
          %v247 = vld [vmem:[%s242 + $0x40] sm:$0xff]
          %v248 = vld [vmem:[%s242 + $0x48] sm:$0xff]
          %v249 = vld [vmem:[%s242 + $0x50] sm:$0xff]
          %v250 = vld [vmem:[%s242 + $0x58] sm:$0xff]
          %v251 = vadd.f32 %v222, %v243
          %v252 = vadd.f32 %v223, %v244
          %v253 = vadd.f32 %v224, %v245
          %v254 = vadd.f32 %v225, %v246
          %v255 = vadd.f32 %v226, %v247
          %v256 = vadd.f32 %v227, %v248
          %v257 = vadd.f32 %v228, %v249
          %v258 = vadd.f32 %v229, %v250
          %v259 = vmax.f32 %v230, %v243
          %v260 = vmax.f32 %v231, %v244
          %v261 = vmax.f32 %v232, %v245
          %v262 = vmax.f32 %v233, %v246
          %v263 = vmax.f32 %v234, %v247
          %v264 = vmax.f32 %v235, %v248
          %v265 = vmax.f32 %v236, %v249
          %v266 = vmax.f32 %v237, %v250
        $region45: #{tpu_custom_call.1} parent=35 // loop_footer
          %s221 = sadd.s32 1, %s217
        $region46: #{tpu_custom_call.1} parent=35 // loop_footer_branch
          %216 = sbr.rel target = $region42
        $region47: #{tpu_custom_call.1} parent=35 // loop_exit
          _
        %v267 = vadd.f32 %v222, %v223
        %v268 = vadd.f32 %v267, %v224
        %v269 = vadd.f32 %v268, %v225
        %270 = vadd.xlane.f32.xlu0 %v269
        %v271 = vpop.xlane.xlu0 %270
        %v272 = vadd.f32 %v226, %v227
        %v273 = vadd.f32 %v272, %v228
        %v274 = vadd.f32 %v273, %v229
        %275 = vadd.xlane.f32.xlu0 %v274
        %v276 = vpop.xlane.xlu0 %275
        %v277 = vmul.f32 %v271, 0.0009765625
        %v278 = vmul.f32 %v276, 0.0009765625
        %v279 = vmax.f32 %v230, %v232
        %v280 = vmax.f32 %v231, %v233
        %v281 = vmax.f32 %v279, %v280
        %282 = vmax.xlane.f32.xlu0 %v281
        %v283 = vpop.xlane.xlu0 %282
        %v284 = vmax.f32 %v234, %v236
        %v285 = vmax.f32 %v235, %v237
        %v286 = vmax.f32 %v284, %v285
        %287 = vmax.xlane.f32.xlu0 %v286
        %v288 = vpop.xlane.xlu0 %287
        %v289 = vld [vmem:[%s1] sm:$0xff]
        %v290 = vld [vmem:[%s1 + $0x8] sm:$0xff]
        %v291 = vmul.f32 %v289, %v277
        %v292 = vmul.f32 %v290, %v278
        %v293 = vld [vmem:[%s2] sm:$0xff]
        %v294 = vld [vmem:[%s2 + $0x8] sm:$0xff]
        %v295 = vmul.f32 %v293, %v283
        %v296 = vmul.f32 %v294, %v288
        %v297 = vadd.f32 %v291, %v295
        %v298 = vadd.f32 %v292, %v296
        %vm299 = vcmask 31744
        %v300 = vsel %vm299, %v297, 0.0
        %v301 = vsel %vm299, %v298, 0.0
        %v302 = vadd.f32 %v300, %v301
        %v303 = vrot.slane %v302, 4
        %v304 = vadd.f32 %v302, %v303
        %v305 = vrot.slane %v304, 2
        %v306 = vadd.f32 %v304, %v305
        %v307 = vrot.slane %v306, 1
        %v308 = vadd.f32 %v306, %v307
        %v309 = vmax.f32 %v308, 0.0
        %v310 = vld [vmem:[%s3] sm:$0xff]
        %v311 = vld [vmem:[%s3 + $0x8] sm:$0xff]
        %v312 = vmul.f32 %v310, %v309
        %v313 = vmul.f32 %v311, %v309
        %v314 = vsel %vm299, %v312, 0.0
        %315 = vadd.xlane.f32.xlu0 %v314
        %v316 = vpop.xlane.xlu0 %315
        %v317 = vsel %vm299, %v313, 0.0
        %318 = vadd.xlane.f32.xlu0 %v317
        %v319 = vpop.xlane.xlu0 %318
        %v320 = vxor.u32 %v316, 2147483648
        %v321 = vxor.u32 %v319, 2147483648
        %v322 = vmul.f32 %v320, 1.442695
        %v323 = vpow.pop %v322
        %v324 = vmul.f32 %v321, 1.442695
        %v325 = vpow.pop %v324
        %v326 = vadd.f32 %v323, 1.0
        %v327 = vadd.f32 %v325, 1.0
        %v328 = vrcp.pop %v326
        %v329 = vmul.f32 1.0, %v328
        %v330 = vrcp.pop %v327
        %v331 = vmul.f32 1.0, %v330
        %v332 = vld [vmem:[%s191] sm:$0xff]
        %v333 = vld [vmem:[%s191 + $0x8] sm:$0xff]
        %v334 = vld [vmem:[%s191 + $0x10] sm:$0xff]
        %v335 = vld [vmem:[%s191 + $0x18] sm:$0xff]
        %v336 = vld [vmem:[%s191 + $0x20] sm:$0xff]
        %v337 = vld [vmem:[%s191 + $0x28] sm:$0xff]
        %v338 = vld [vmem:[%s191 + $0x30] sm:$0xff]
        %v339 = vld [vmem:[%s191 + $0x38] sm:$0xff]
        %v340 = vld [vmem:[%s191 + $0x40] sm:$0xff]
        %v341 = vld [vmem:[%s191 + $0x48] sm:$0xff]
        %v342 = vld [vmem:[%s191 + $0x50] sm:$0xff]
        %v343 = vld [vmem:[%s191 + $0x58] sm:$0xff]
        %v344 = vld [vmem:[%s191 + $0x60] sm:$0xff]
        %v345 = vld [vmem:[%s191 + $0x68] sm:$0xff]
        %v346 = vld [vmem:[%s191 + $0x70] sm:$0xff]
        %v347 = vld [vmem:[%s191 + $0x78] sm:$0xff]
        %v348 = vmul.f32 %v332, %v329
        %v349 = vmul.f32 %v333, %v329
        %v350 = vmul.f32 %v334, %v329
        %v351 = vmul.f32 %v335, %v329
        %v352 = vmul.f32 %v336, %v329
        %v353 = vmul.f32 %v337, %v329
        %v354 = vmul.f32 %v338, %v329
        %v355 = vmul.f32 %v339, %v329
        %v356 = vmul.f32 %v340, %v331
        %v357 = vmul.f32 %v341, %v331
        %v358 = vmul.f32 %v342, %v331
        %v359 = vmul.f32 %v343, %v331
        %v360 = vmul.f32 %v344, %v331
        %v361 = vmul.f32 %v345, %v331
        %v362 = vmul.f32 %v346, %v331
        %v363 = vmul.f32 %v347, %v331
        %364 = vst [vmem:[%s215] sm:$0xff] %v348
        %365 = vst [vmem:[%s215 + $0x8] sm:$0xff] %v349
        %366 = vst [vmem:[%s215 + $0x10] sm:$0xff] %v350
        %367 = vst [vmem:[%s215 + $0x18] sm:$0xff] %v351
        %368 = vst [vmem:[%s215 + $0x20] sm:$0xff] %v352
        %369 = vst [vmem:[%s215 + $0x28] sm:$0xff] %v353
        %370 = vst [vmem:[%s215 + $0x30] sm:$0xff] %v354
        %371 = vst [vmem:[%s215 + $0x38] sm:$0xff] %v355
        %372 = vst [vmem:[%s215 + $0x40] sm:$0xff] %v356
        %373 = vst [vmem:[%s215 + $0x48] sm:$0xff] %v357
        %374 = vst [vmem:[%s215 + $0x50] sm:$0xff] %v358
        %375 = vst [vmem:[%s215 + $0x58] sm:$0xff] %v359
        %376 = vst [vmem:[%s215 + $0x60] sm:$0xff] %v360
        %377 = vst [vmem:[%s215 + $0x68] sm:$0xff] %v361
        %378 = vst [vmem:[%s215 + $0x70] sm:$0xff] %v362
        %379 = vst [vmem:[%s215 + $0x78] sm:$0xff] %v363
        %s380 = sand.u32 %s118, 1
        %s381 = scalar_lea.sflag [#allocation4], %s380
        %s382 = sand.u32 %s118, 1
        %s383 = smul.addr %s382, 128
        %s384 = scalar_lea.vmem [#allocation5], %s383
        // Predicated region
        $region48: #{tpu_custom_call.1} parent=35 // pred_check
          %p385 = pneg %p128
        $region49: #{tpu_custom_call.1} parent=35 // pred_check_branch
          %387 = sbr.rel (%p385) target = $region51
        $region50: #{tpu_custom_call.1} parent=35 // pred_region
          %s389 = ssub.s32 2048, 2048
          %390 = vsyncadd %s381, %s389
          %s391 = smul.addr %s21, 16
          %s392 = smul.addr %s391, 128
          %s393 = scalar_lea.hbm %s4, %s392
          %s394 = sshll.u32 %s384, 4
          %s395 = int_to_ptr.vmem [resolvable:$true] %s394
          %400 = dma.vmem_to_hbm [thread:$0]  %s395, 2048, %s393, %s381, 1024, 1024, 64
        $region51: #{tpu_custom_call.1} parent=35 // pred_fallthru
          _
      $region36: #{tpu_custom_call.1} parent=5 // pred_fallthru
        _
      %p401 = scmp.le.s32.totalorder 2, %s16
      // Predicated region
      $region52: #{tpu_custom_call.1} parent=5 // pred_check
        %p402 = pneg %p401
      $region53: #{tpu_custom_call.1} parent=5 // pred_check_branch
        %404 = sbr.rel (%p402) target = $region55
      $region54: #{tpu_custom_call.1} parent=5 // pred_region
        %s405 = ssub.s32 %s16, 2
        // Predicated region
        $region56: #{tpu_custom_call.1} parent=54 // pred_check
          %p406 = pneg %p134
        $region57: #{tpu_custom_call.1} parent=54 // pred_check_branch
          %408 = sbr.rel (%p406) target = $region59
        $region58: #{tpu_custom_call.1} parent=54 // pred_region
          %s409 = sand.u32 %s119, 1
          %s410 = scalar_lea.sflag [#allocation4], %s409
          %s411 = sand.u32 %s119, 1
          %s412 = smul.addr %s411, 128
          %s413 = scalar_lea.vmem [#allocation5], %s412
          %414 = dma.done %s410, 2048
        $region59: #{tpu_custom_call.1} parent=54 // pred_fallthru
          _
      $region55: #{tpu_custom_call.1} parent=5 // pred_fallthru
        _
    $region6: #{tpu_custom_call.1} parent=1 // loop_footer
      %s20 = sadd.s32 1, %s16
    $region7: #{tpu_custom_call.1} parent=1 // loop_footer_branch
      %15 = sbr.rel target = $region3
    $region8: #{tpu_custom_call.1} parent=1 // loop_exit
      _
    %415 = vsyncpa [#allocation3], 1
    %s416 = scalar_lea.sflag [#allocation3], 1
    %417 = vsyncpa %s416, 1
    %418 = vsyncpa [#allocation4], 1
    %s419 = scalar_lea.sflag [#allocation4], 1
    %420 = vsyncpa %s419, 1

</llo_original>
